<compile_context>
chip_gen: v7x
topology: tpu7x:2x2x1
jax: 0.10.0
libtpu: 0.0.40
codegen_flags: <defaults>
</compile_context>

<pallas_src>
import numpy as np
import jax
import jax.numpy as jnp
from jax import lax
from jax.experimental import pallas as pl
from jax.experimental.pallas import tpu as pltpu


# ------------------------------ fused Pallas kernel ------------------------------ #

def _ae_fused_kernel(x_ref, enc_rhs_ref, enc_b_ref, dec_rhs_ref, dec_b_ref,
                     mtop_ref, mbot_ref, lat_ref, rec_ref):
    """One folded batch tile (Bt elements) per grid step.

    x_ref       : (Bt, 2*Cin, Hh, Wp)   zero-padded input, rows split by parity
                                        (channel index = r*Cin + ci)
    enc_rhs_ref : (4*Cin*Wp, Chid*Wo)   Conv2d band matrix, K order (kh, ci, v)
    enc_b_ref   : (1, Chid*Wo)          Conv2d bias row,    N order (co, ow)
    dec_rhs_ref : (3*Chid*Wo, Cout*2W)  ConvT band matrix,  K order (d, ci, n)
    dec_b_ref   : (1, Cout*2W)          ConvT bias row,     N order (co, u=py*W+ox)
    mtop_ref    : (Bt*Ho, 1)  0 on the first row of each folded batch element, else 1
    mbot_ref    : (Bt*Ho, 1)  0 on the last  row of each folded batch element, else 1
    lat_ref     : (Bt*Ho, Chid*Wo)      latent,      rows (b, oh), cols (co, ow)
    rec_ref     : (Bt*Ho, Cout*2W)      reconstruct, rows (b, p),  cols (co, py*W+ox)
    """
    Bt, two_cin, Hh, Wp = x_ref.shape
    Cin = two_cin // 2
    Ho = Hh - 1
    M = Bt * Ho
    f32 = jnp.float32

    # ---- encoder: Conv2d(k=4, s=2, p=1) + bias + ReLU as ONE GEMM -----------------
    # LHS K order (kh, ci, v); kh = 2*a + r, so (a, r) lexicographic == natural kh order.
    pieces = []
    for a in (0, 1):
        for r in (0, 1):
            for ci in range(Cin):
                pieces.append(x_ref[:, r * Cin + ci, a:a + Ho, :])    # (Bt, Ho, Wp)
    # Ho == 8 here, so collapsing (Bt, Ho) -> Bt*Ho is sublane-tile aligned (free).
    lhs_enc = jnp.concatenate(pieces, axis=-1).reshape(M, 4 * Cin * Wp)

    lat = jnp.dot(lhs_enc, enc_rhs_ref[...], preferred_element_type=f32)
    lat = jnp.maximum(lat + enc_b_ref[...], 0.0)                      # (M, Chid*Wo)
    lat_ref[...] = lat

    # ---- decoder: ConvTranspose2d(k=4, s=2, p=1), polyphase, as ONE GEMM ----------
    # Row taps m = p-1 / p / p+1 become sublane shifts of the latent; the precomputed
    # masks zero rows that would otherwise leak across folded batch elements.
    C = lat.shape[1]
    zrow = jnp.zeros((1, C), f32)
    down = jnp.concatenate([zrow, lat[:M - 1, :]], axis=0) * mtop_ref[...]   # m = p - 1
    up = jnp.concatenate([lat[1:, :], zrow], axis=0) * mbot_ref[...]         # m = p + 1
    lhs_dec = jnp.concatenate([down, lat, up], axis=-1)               # (M, 3*Chid*Wo)

    rec = jnp.dot(lhs_dec, dec_rhs_ref[...], preferred_element_type=f32)
    rec_ref[...] = rec + dec_b_ref[...]


# ------------------------- wrapper-side constant builders ------------------------- #

def _enc_band_rhs(w1, Wp, Wo):
    """(4*Cin*Wp, Chid*Wo) band matrix: K = (kh, ci, padded col v), N = (co, ow)."""
    Chid, Cin, KH, KW = w1.shape
    sel = np.zeros((KW, Wp, Wo), np.float32)          # sel[kw, v, ow] = (v == 2*ow + kw)
    for kw in range(KW):
        for ow in range(Wo):
            sel[kw, 2 * ow + kw, ow] = 1.0
    band = jnp.einsum('oihw,wvq->hivoq', w1.astype(jnp.float32), jnp.asarray(sel))
    return band.reshape(KH * Cin * Wp, Chid * Wo)


def _dec_band_rhs(wt, Wo, W):
    """(3*Chid*Wo, Cout*2W) band matrix: K = (d, ci, n), N = (co, u=py*W+ox).

    Output pixel (oy=2p+py, ox) accumulates lat[m=p+d-1, n] * wT[ci, co, ky, kx] with
    ky = py + 3 - 2d and kx = ox + 1 - 2n; taps outside [0, 4) are dropped (this also
    implements the column padding crop).
    """
    Chid, Cout, KH, KW = wt.shape
    G = np.zeros((3, KH, KW, Wo, 2 * W), np.float32)
    for d in range(3):
        for py in range(2):
            ky = py + 3 - 2 * d
            if not (0 <= ky < KH):
                continue
            for ox in range(W):
                u = py * W + ox
                for n in range(Wo):
                    kx = ox + 1 - 2 * n
                    if 0 <= kx < KW:
                        G[d, ky, kx, n, u] = 1.0
    band = jnp.einsum('ioyx,dyxnu->dinou', wt.astype(jnp.float32), jnp.asarray(G))
    return band.reshape(3 * Chid * Wo, Cout * 2 * W)


# ----------------------------------- wrapper ------------------------------------- #

def autoencoder_simple_forward(x, params):
    """Matches AutoEncoderSimple.forward: returns (reconstruct, latent_sample)."""
    w1, b1 = params["w_conv1"], params["b_conv1"]
    wt, bt = params["w_convT1"], params["b_convT1"]
    B, Cin, H, W = x.shape
    Chid = w1.shape[0]
    Cout = wt.shape[1]
    assert H % 2 == 0 and W % 2 == 0
    Ho, Wo = H // 2, W // 2
    Hh, Wp = Ho + 1, W + 2
    K1, N1 = 4 * Cin * Wp, Chid * Wo
    K2, N2 = 3 * Chid * Wo, Cout * 2 * W

    # Batch folding: put Bt*Ho rows on the GEMM M axis per grid step (target ~256 rows
    # to amortize per-step overhead and fill MXU rows).  Bt must divide B.  For large B
    # this yields a multi-step grid that "parallel" shards across the 2 TCs on v7x; on
    # single-TC v5e/v6e fewer, fatter steps win (the demo collapses to grid=(1,)).
    bt_fold = 1
    for d in range(1, B + 1):
        if B % d == 0 and d * Ho <= 256:
            bt_fold = d
    grid_len = B // bt_fold
    M = bt_fold * Ho

    # Minimal glue: zero-pad once, pack the two padded-row parities into ONE input array
    # (one input DMA per grid step).  Channel index in the packed array = r*Cin + ci.
    x_pad = jnp.pad(x.astype(jnp.float32), ((0, 0), (0, 0), (1, 1), (1, 1)))
    x_par = jnp.concatenate([x_pad[:, :, 0::2, :], x_pad[:, :, 1::2, :]], axis=1)

    # Precomputed weight band matrices + broadcast bias rows (tiny, resident in VMEM).
    enc_rhs = _enc_band_rhs(w1, Wp, Wo)                               # (K1, N1)
    dec_rhs = _dec_band_rhs(wt, Wo, W)                                # (K2, N2)
    enc_bias = jnp.repeat(b1.astype(jnp.float32), Wo).reshape(1, N1)
    dec_bias = jnp.repeat(bt.astype(jnp.float32), 2 * W).reshape(1, N2)

    # Row masks for the decoder's +-1 row taps at folded-batch boundaries.
    mtop = np.ones((M, 1), np.float32); mtop[0::Ho] = 0.0
    mbot = np.ones((M, 1), np.float32); mbot[Ho - 1::Ho] = 0.0

    cst = lambda g: (0, 0)
    lat2d, rec2d = pl.pallas_call(
        _ae_fused_kernel,
        out_shape=(
            jax.ShapeDtypeStruct((B * Ho, N1), jnp.float32),
            jax.ShapeDtypeStruct((B * Ho, N2), jnp.float32),
        ),
        grid=(grid_len,),
        in_specs=[
            pl.BlockSpec((bt_fold, 2 * Cin, Hh, Wp), lambda g: (g, 0, 0, 0)),
            pl.BlockSpec((K1, N1), cst),
            pl.BlockSpec((1, N1), cst),
            pl.BlockSpec((K2, N2), cst),
            pl.BlockSpec((1, N2), cst),
            pl.BlockSpec((M, 1), cst),
            pl.BlockSpec((M, 1), cst),
        ],
        out_specs=(
            pl.BlockSpec((M, N1), lambda g: (g, 0)),
            pl.BlockSpec((M, N2), lambda g: (g, 0)),
        ),
        compiler_params=pltpu.CompilerParams(
            dimension_semantics=("parallel",)),   # batch-tile axis (megacore on v7x)
    )(x_par, enc_rhs, enc_bias, dec_rhs, dec_bias,
      jnp.asarray(mtop), jnp.asarray(mbot))

    # Cheap NCHW views in the wrapper (keeps kernel stores single and dense).
    latent = lat2d.reshape(B, Ho, Chid, Wo).transpose(0, 2, 1, 3)
    reconstruct = (rec2d.reshape(B, Ho, Cout, 2, W)
                   .transpose(0, 2, 1, 3, 4)
                   .reshape(B, Cout, H, W))
    return reconstruct, latent


# ------------------------------------- main --------------------------------------- #

if __name__ == "__main__":
    # Module config at small shapes: img_size=(1, 16, 16), hid_channels=2, batch=2.
    n_chan, H, W = 1, 16, 16
    hid_channels = 2
    B = 2

    key = jax.random.PRNGKey(0)
    kx, k1, k2, k3, k4 = jax.random.split(key, 5)

    x = jax.random.normal(kx, (B, n_chan, H, W), jnp.float32)

    params = {
        # Conv2d weight: (out_channels, in_channels, KH, KW)
        "w_conv1": 0.1 * jax.random.normal(k1, (hid_channels, n_chan, 4, 4), jnp.float32),
        "b_conv1": 0.1 * jax.random.normal(k2, (hid_channels,), jnp.float32),
        # ConvTranspose2d weight: (in_channels, out_channels, KH, KW)
        "w_convT1": 0.1 * jax.random.normal(k3, (hid_channels, n_chan, 4, 4), jnp.float32),
        "b_convT1": 0.1 * jax.random.normal(k4, (n_chan,), jnp.float32),
    }

    reconstruct, latent = jax.jit(autoencoder_simple_forward)(x, params)
    jax.block_until_ready((reconstruct, latent))

    # Pure-JAX reference (same semantics as the PyTorch module) for validation.
    dn = ("NCHW", "OIHW", "NCHW")
    ref_lat = lax.conv_general_dilated(
        x, params["w_conv1"], window_strides=(2, 2), padding=[(1, 1), (1, 1)],
        dimension_numbers=dn) + params["b_conv1"].reshape(1, -1, 1, 1)
    ref_lat = jnp.maximum(ref_lat, 0.0)
    w_eff = jnp.flip(params["w_convT1"], axis=(2, 3)).transpose(1, 0, 2, 3)
    ref_rec = lax.conv_general_dilated(
        ref_lat, w_eff, window_strides=(1, 1), padding=[(2, 2), (2, 2)],
        lhs_dilation=(2, 2), dimension_numbers=dn) + params["b_convT1"].reshape(1, -1, 1, 1)

    assert latent.shape == (B, hid_channels, H // 2, W // 2)
    assert reconstruct.shape == (B, n_chan, H, W)
    np.testing.assert_allclose(np.asarray(latent), np.asarray(ref_lat), atol=1e-4, rtol=1e-4)
    np.testing.assert_allclose(np.asarray(reconstruct), np.asarray(ref_rec), atol=1e-4, rtol=1e-4)

    print("KERNEL_OK")
</pallas_src>

<mosaic_0001>
module attributes {stable_mosaic.version = 11 : i64} {
  func.func @_ae_fused_kernel(%arg0: i32, %arg1: memref<2x2x9x18xf32, #tpu.memory_space<vmem>>, %arg2: memref<72x16xf32, #tpu.memory_space<vmem>>, %arg3: memref<1x16xf32, #tpu.memory_space<vmem>>, %arg4: memref<48x32xf32, #tpu.memory_space<vmem>>, %arg5: memref<1x32xf32, #tpu.memory_space<vmem>>, %arg6: memref<16x1xf32, #tpu.memory_space<vmem>>, %arg7: memref<16x1xf32, #tpu.memory_space<vmem>>, %arg8: memref<16x16xf32, #tpu.memory_space<vmem>>, %arg9: memref<16x32xf32, #tpu.memory_space<vmem>>) attributes {dimension_semantics = [#tpu.dimension_semantics<parallel>], iteration_bounds = array<i64: 1>, scalar_prefetch = 0 : i64, scratch_operands = 0 : i64, tpu.core_type = #tpu.core_type<tc>, window_params = [{transform_indices = @transform_0, window_bounds = array<i64: 2, 2, 9, 18>}, {pipeline_mode = #tpu.pipeline_mode<synchronous>, transform_indices = @transform_1, window_bounds = array<i64: 72, 16>}, {pipeline_mode = #tpu.pipeline_mode<synchronous>, transform_indices = @transform_2, window_bounds = array<i64: 1, 16>}, {pipeline_mode = #tpu.pipeline_mode<synchronous>, transform_indices = @transform_3, window_bounds = array<i64: 48, 32>}, {pipeline_mode = #tpu.pipeline_mode<synchronous>, transform_indices = @transform_4, window_bounds = array<i64: 1, 32>}, {pipeline_mode = #tpu.pipeline_mode<synchronous>, transform_indices = @transform_5, window_bounds = array<i64: 16, 1>}, {pipeline_mode = #tpu.pipeline_mode<synchronous>, transform_indices = @transform_6, window_bounds = array<i64: 16, 1>}, {transform_indices = @transform_7, window_bounds = array<i64: 16, 16>}, {transform_indices = @transform_8, window_bounds = array<i64: 16, 32>}]} {
    %c0 = arith.constant 0 : index
    %c0_0 = arith.constant 0 : index
    %c0_1 = arith.constant 0 : index
    %c0_2 = arith.constant 0 : index
    %0 = vector.load %arg1[%c0, %c0_0, %c0_1, %c0_2] : memref<2x2x9x18xf32, #tpu.memory_space<vmem>>, vector<2x1x8x18xf32>
    %1 = vector.shape_cast %0 : vector<2x1x8x18xf32> to vector<2x8x18xf32>
    %c0_3 = arith.constant 0 : index
    %c1 = arith.constant 1 : index
    %c0_4 = arith.constant 0 : index
    %c0_5 = arith.constant 0 : index
    %2 = vector.load %arg1[%c0_3, %c1, %c0_4, %c0_5] : memref<2x2x9x18xf32, #tpu.memory_space<vmem>>, vector<2x1x8x18xf32>
    %3 = vector.shape_cast %2 : vector<2x1x8x18xf32> to vector<2x8x18xf32>
    %c0_6 = arith.constant 0 : index
    %c0_7 = arith.constant 0 : index
    %c1_8 = arith.constant 1 : index
    %c0_9 = arith.constant 0 : index
    %4 = vector.load %arg1[%c0_6, %c0_7, %c1_8, %c0_9] : memref<2x2x9x18xf32, #tpu.memory_space<vmem>>, vector<2x1x8x18xf32>
    %5 = vector.shape_cast %4 : vector<2x1x8x18xf32> to vector<2x8x18xf32>
    %c0_10 = arith.constant 0 : index
    %c1_11 = arith.constant 1 : index
    %c1_12 = arith.constant 1 : index
    %c0_13 = arith.constant 0 : index
    %6 = vector.load %arg1[%c0_10, %c1_11, %c1_12, %c0_13] : memref<2x2x9x18xf32, #tpu.memory_space<vmem>>, vector<2x1x8x18xf32>
    %7 = vector.shape_cast %6 : vector<2x1x8x18xf32> to vector<2x8x18xf32>
    %8 = tpu.concatenate %1, %3, %5, %7 in 2 : vector<2x8x18xf32>, vector<2x8x18xf32>, vector<2x8x18xf32>, vector<2x8x18xf32> -> vector<2x8x72xf32>
    %9 = vector.shape_cast %8 : vector<2x8x72xf32> to vector<16x72xf32>
    %c0_14 = arith.constant 0 : index
    %c0_15 = arith.constant 0 : index
    %10 = vector.load %arg2[%c0_14, %c0_15] : memref<72x16xf32, #tpu.memory_space<vmem>>, vector<72x16xf32>
    %cst = arith.constant dense<0.000000e+00> : vector<16x16xf32>
    %11 = tpu.matmul %9, %10, %cst {dimension_numbers = #tpu.dot_dimension_numbers<[1], [0], [0], [1], [0, 0, 1, 1], [], []>} : vector<16x72xf32>, vector<72x16xf32>, vector<16x16xf32> -> vector<16x16xf32>
    %c0_16 = arith.constant 0 : index
    %c0_17 = arith.constant 0 : index
    %12 = vector.load %arg3[%c0_16, %c0_17] : memref<1x16xf32, #tpu.memory_space<vmem>>, vector<1x16xf32>
    %13 = vector.broadcast %12 : vector<1x16xf32> to vector<16x16xf32>
    %14 = arith.addf %11, %13 : vector<16x16xf32>
    %cst_18 = arith.constant 0.000000e+00 : f32
    %15 = vector.broadcast %cst_18 : f32 to vector<16x16xf32>
    %16 = arith.maximumf %14, %15 : vector<16x16xf32>
    %c0_19 = arith.constant 0 : index
    %c0_20 = arith.constant 0 : index
    %17 = vector.load %arg8[%c0_19, %c0_20] : memref<16x16xf32, #tpu.memory_space<vmem>>, vector<16x16xf32>
    tpu.vector_store %arg8[%c0_19, %c0_20], %16 {strides = array<i32>} : memref<16x16xf32, #tpu.memory_space<vmem>>, vector<16x16xf32>,
    %cst_21 = arith.constant 0.000000e+00 : f32
    %18 = vector.broadcast %cst_21 : f32 to vector<1x16xf32>
    %19 = vector.extract_strided_slice %16 {offsets = [0, 0], sizes = [15, 16], strides = [1, 1]} : vector<16x16xf32> to vector<15x16xf32>
    %20 = tpu.concatenate %18, %19 in 0 : vector<1x16xf32>, vector<15x16xf32> -> vector<16x16xf32>
    %c0_22 = arith.constant 0 : index
    %c0_23 = arith.constant 0 : index
    %21 = vector.load %arg6[%c0_22, %c0_23] : memref<16x1xf32, #tpu.memory_space<vmem>>, vector<16x1xf32>
    %22 = vector.broadcast %21 : vector<16x1xf32> to vector<16x16xf32>
    %23 = arith.mulf %20, %22 : vector<16x16xf32>
    %24 = vector.extract_strided_slice %16 {offsets = [1, 0], sizes = [15, 16], strides = [1, 1]} : vector<16x16xf32> to vector<15x16xf32>
    %25 = tpu.concatenate %24, %18 in 0 : vector<15x16xf32>, vector<1x16xf32> -> vector<16x16xf32>
    %c0_24 = arith.constant 0 : index
    %c0_25 = arith.constant 0 : index
    %26 = vector.load %arg7[%c0_24, %c0_25] : memref<16x1xf32, #tpu.memory_space<vmem>>, vector<16x1xf32>
    %27 = vector.broadcast %26 : vector<16x1xf32> to vector<16x16xf32>
    %28 = arith.mulf %25, %27 : vector<16x16xf32>
    %29 = tpu.concatenate %23, %16, %28 in 1 : vector<16x16xf32>, vector<16x16xf32>, vector<16x16xf32> -> vector<16x48xf32>
    %c0_26 = arith.constant 0 : index
    %c0_27 = arith.constant 0 : index
    %30 = vector.load %arg4[%c0_26, %c0_27] : memref<48x32xf32, #tpu.memory_space<vmem>>, vector<48x32xf32>
    %cst_28 = arith.constant dense<0.000000e+00> : vector<16x32xf32>
    %31 = tpu.matmul %29, %30, %cst_28 {dimension_numbers = #tpu.dot_dimension_numbers<[1], [0], [0], [1], [0, 0, 1, 1], [], []>} : vector<16x48xf32>, vector<48x32xf32>, vector<16x32xf32> -> vector<16x32xf32>
    %c0_29 = arith.constant 0 : index
    %c0_30 = arith.constant 0 : index
    %32 = vector.load %arg5[%c0_29, %c0_30] : memref<1x32xf32, #tpu.memory_space<vmem>>, vector<1x32xf32>
    %33 = vector.broadcast %32 : vector<1x32xf32> to vector<16x32xf32>
    %34 = arith.addf %31, %33 : vector<16x32xf32>
    %c0_31 = arith.constant 0 : index
    %c0_32 = arith.constant 0 : index
    %35 = vector.load %arg9[%c0_31, %c0_32] : memref<16x32xf32, #tpu.memory_space<vmem>>, vector<16x32xf32>
    tpu.vector_store %arg9[%c0_31, %c0_32], %34 {strides = array<i32>} : memref<16x32xf32, #tpu.memory_space<vmem>>, vector<16x32xf32>,
    return
  }
  func.func @transform_0(%arg0: i32) -> (i32, i32, i32, i32) {
    %c0_i32 = arith.constant 0 : i32
    %c0_i32_0 = arith.constant 0 : i32
    %c0_i32_1 = arith.constant 0 : i32
    %c0_i32_2 = arith.constant 0 : i32
    return %arg0, %c0_i32, %c0_i32_0, %c0_i32_1 : i32, i32, i32, i32
  }
  func.func @transform_1(%arg0: i32) -> (i32, i32) {
    %c0_i32 = arith.constant 0 : i32
    %c0_i32_0 = arith.constant 0 : i32
    %c0_i32_1 = arith.constant 0 : i32
    return %c0_i32, %c0_i32_0 : i32, i32
  }
  func.func @transform_2(%arg0: i32) -> (i32, i32) {
    %c0_i32 = arith.constant 0 : i32
    %c0_i32_0 = arith.constant 0 : i32
    %c0_i32_1 = arith.constant 0 : i32
    return %c0_i32, %c0_i32_0 : i32, i32
  }
  func.func @transform_3(%arg0: i32) -> (i32, i32) {
    %c0_i32 = arith.constant 0 : i32
    %c0_i32_0 = arith.constant 0 : i32
    %c0_i32_1 = arith.constant 0 : i32
    return %c0_i32, %c0_i32_0 : i32, i32
  }
  func.func @transform_4(%arg0: i32) -> (i32, i32) {
    %c0_i32 = arith.constant 0 : i32
    %c0_i32_0 = arith.constant 0 : i32
    %c0_i32_1 = arith.constant 0 : i32
    return %c0_i32, %c0_i32_0 : i32, i32
  }
  func.func @transform_5(%arg0: i32) -> (i32, i32) {
    %c0_i32 = arith.constant 0 : i32
    %c0_i32_0 = arith.constant 0 : i32
    %c0_i32_1 = arith.constant 0 : i32
    return %c0_i32, %c0_i32_0 : i32, i32
  }
  func.func @transform_6(%arg0: i32) -> (i32, i32) {
    %c0_i32 = arith.constant 0 : i32
    %c0_i32_0 = arith.constant 0 : i32
    %c0_i32_1 = arith.constant 0 : i32
    return %c0_i32, %c0_i32_0 : i32, i32
  }
  func.func @transform_7(%arg0: i32) -> (i32, i32) {
    %c0_i32 = arith.constant 0 : i32
    %c0_i32_0 = arith.constant 0 : i32
    return %arg0, %c0_i32 : i32, i32
  }
  func.func @transform_8(%arg0: i32) -> (i32, i32) {
    %c0_i32 = arith.constant 0 : i32
    %c0_i32_0 = arith.constant 0 : i32
    return %arg0, %c0_i32 : i32, i32
  }
}

</mosaic_0001>

<llo_original>
// kernel: autoencoder_simple_forward.1
$region0: #{autoencoder_simple_forward.1}
  #allocation0 [shape = 'u32[]', space=smem, size = 0x4, offset = 0x4, fixed_abs, tag = 'smem constant byte address 0x4 - core index']
  #allocation1 [shape = 'u32[144,128]{1,0:T(1,128)}', space=vmem, size = 0x12000, scoped, tag = 'internal scratch']
  %s0 = inlined_call_operand.vmem [shape: f32[2,2,9,18], index: 0, kind: input, shape index: {}]
  %s1 = inlined_call_operand.vmem [shape: f32[72,16], index: 1, kind: input, shape index: {}]
  %s2 = inlined_call_operand.vmem [shape: f32[1,16], index: 2, kind: input, shape index: {}]
  %s3 = inlined_call_operand.vmem [shape: f32[48,32], index: 3, kind: input, shape index: {}]
  %s4 = inlined_call_operand.vmem [shape: f32[1,32], index: 4, kind: input, shape index: {}]
  %s5 = inlined_call_operand.vmem [shape: f32[16,1], index: 5, kind: input, shape index: {}]
  %s6 = inlined_call_operand.vmem [shape: f32[16,1], index: 6, kind: input, shape index: {}]
  %s7 = inlined_call_operand.vmem [shape: f32[16,16], index: 7, kind: output, shape index: {0}]
  %s8 = inlined_call_operand.vmem [shape: f32[16,32], index: 8, kind: output, shape index: {1}]
  %9 = xla_tuple %s7, %s8
  %s10 = sld [smem:[#allocation0]]
  $region46: #{autoencoder_simple_forward.1} parent=0
    _
  %s12 = ssub.s32 1, %s10
  %s13 = scalar_select 0, %s12, %s10
  // Predicated region
  $region2: #{autoencoder_simple_forward.1} parent=0 // pred_check
    _
  $region3: #{autoencoder_simple_forward.1} parent=0 // pred_check_branch
    %15 = sbr.rel (0) target = $region5
  $region4: #{autoencoder_simple_forward.1} parent=0 // pred_region
    _
  $region5: #{autoencoder_simple_forward.1} parent=0 // pred_fallthru
    _
  // Predicated region
  $region6: #{autoencoder_simple_forward.1} parent=0 // pred_check
    _
  $region7: #{autoencoder_simple_forward.1} parent=0 // pred_check_branch
    %17 = sbr.rel (0) target = $region9
  $region8: #{autoencoder_simple_forward.1} parent=0 // pred_region
    _
  $region9: #{autoencoder_simple_forward.1} parent=0 // pred_fallthru
    _
  // Predicated region
  $region10: #{autoencoder_simple_forward.1} parent=0 // pred_check
    _
  $region11: #{autoencoder_simple_forward.1} parent=0 // pred_check_branch
    %19 = sbr.rel (0) target = $region13
  $region12: #{autoencoder_simple_forward.1} parent=0 // pred_region
    _
  $region13: #{autoencoder_simple_forward.1} parent=0 // pred_fallthru
    _
  // Predicated region
  $region14: #{autoencoder_simple_forward.1} parent=0 // pred_check
    _
  $region15: #{autoencoder_simple_forward.1} parent=0 // pred_check_branch
    %21 = sbr.rel (0) target = $region17
  $region16: #{autoencoder_simple_forward.1} parent=0 // pred_region
    _
  $region17: #{autoencoder_simple_forward.1} parent=0 // pred_fallthru
    _
  // Predicated region
  $region18: #{autoencoder_simple_forward.1} parent=0 // pred_check
    _
  $region19: #{autoencoder_simple_forward.1} parent=0 // pred_check_branch
    %23 = sbr.rel (0) target = $region21
  $region20: #{autoencoder_simple_forward.1} parent=0 // pred_region
    _
  $region21: #{autoencoder_simple_forward.1} parent=0 // pred_fallthru
    _
  // Predicated region
  $region22: #{autoencoder_simple_forward.1} parent=0 // pred_check
    _
  $region23: #{autoencoder_simple_forward.1} parent=0 // pred_check_branch
    %25 = sbr.rel (0) target = $region25
  $region24: #{autoencoder_simple_forward.1} parent=0 // pred_region
    _
  $region25: #{autoencoder_simple_forward.1} parent=0 // pred_fallthru
    _
  // Predicated region
  $region26: #{autoencoder_simple_forward.1} parent=0 // pred_check
    _
  $region27: #{autoencoder_simple_forward.1} parent=0 // pred_check_branch
    %27 = sbr.rel (0) target = $region29
  $region28: #{autoencoder_simple_forward.1} parent=0 // pred_region
    _
  $region29: #{autoencoder_simple_forward.1} parent=0 // pred_fallthru
    _
  %v28 = vld [vmem:[%s0] sm:$0xff]
  %v29 = vld [vmem:[%s0 + $0x20] sm:$0xff]
  %s30 = scalar_lea.vmem %s0, 16
  %v31 = vld [vmem:[%s30] sm:$0xff]
  %v32 = vld [vmem:[%s30 + $0x20] sm:$0xff]
  %v33 = vld [vmem:[%s0 + $0x1] sm:$0xff]
  %v34 = vld [vmem:[%s0 + $0x21] sm:$0xff]
  %v35 = vld [vmem:[%s30 + $0x1] sm:$0xff]
  %v36 = vld [vmem:[%s30 + $0x21] sm:$0xff]
  %39 = vrot.lane.b32.xlu0 %v31, 18
  %v40 = vpop.permute.xlu0 %39
  %41 = vrot.lane.b32.xlu0 %v32, 18
  %v42 = vpop.permute.xlu0 %41
  %47 = vrot.lane.b32.xlu0 %v33, 36
  %v48 = vpop.permute.xlu0 %47
  %49 = vrot.lane.b32.xlu0 %v34, 36
  %v50 = vpop.permute.xlu0 %49
  %55 = vrot.lane.b32.xlu0 %v35, 54
  %v56 = vpop.permute.xlu0 %55
  %57 = vrot.lane.b32.xlu0 %v36, 54
  %v58 = vpop.permute.xlu0 %57
  %vm61 = vcmask 146432
  %v62 = vsel %vm61, %v28, %v40
  %v63 = vsel %vm61, %v29, %v42
  %vm64 = vcmask 293888
  %v65 = vsel %vm64, %v62, %v48
  %v66 = vsel %vm64, %v63, %v50
  %vm67 = vcmask 441344
  %v68 = vsel %vm67, %v65, %v56
  %v69 = vsel %vm67, %v66, %v58
  %v70 = vld [vmem:[%s1] sm:$0xff]
  %v71 = vld [vmem:[%s1 + $0x8] sm:$0xff]
  %v72 = vld [vmem:[%s1 + $0x10] sm:$0xff]
  %v73 = vld [vmem:[%s1 + $0x18] sm:$0xff]
  %v74 = vld [vmem:[%s1 + $0x20] sm:$0xff]
  %v75 = vld [vmem:[%s1 + $0x28] sm:$0xff]
  %v76 = vld [vmem:[%s1 + $0x30] sm:$0xff]
  %v77 = vld [vmem:[%s1 + $0x38] sm:$0xff]
  %v78 = vld [vmem:[%s1 + $0x40] sm:$0xff]
  %v79 = vld [vmem:[%s2] sm:$0x1]
  %v81 = vlaneseq
  %v82 = vshrl.u32 %v81, 7
  %v83 = vsub.s32 0, %v82
  %v84 = vrot.slane %v79, %v83
  %vm86 = vcmask 588800
  %v88 = vsel %vm86, %v68, 0
  %v91 = vsel %vm86, %v69, 0
  %93 = vmatprep.subr.mxu0 0.0
  %94 = vmatpush1.msra.mxu0 %v70
  %95 = vmatprep.subr.mxu0 0.0
  %96 = vmatpush1.msra.mxu0 %v71
  %97 = vmatprep.subr.mxu0 0.0
  %98 = vmatpush1.msra.mxu0 %v72
  %99 = vmatprep.subr.mxu0 0.0
  %100 = vmatpush1.msra.mxu0 %v73
  %101 = vmatprep.subr.mxu0 0.0
  %102 = vmatpush1.msra.mxu0 %v74
  %103 = vmatprep.subr.mxu0 0.0
  %104 = vmatpush1.msra.mxu0 %v75
  %105 = vmatprep.subr.mxu0 0.0
  %106 = vmatpush1.msra.mxu0 %v76
  %107 = vmatprep.subr.mxu0 0.0
  %108 = vmatpush1.msra.mxu0 %v77
  %109 = vmatprep.subr.mxu0 0.0
  %110 = vmatpush1.msra.mxu0 %v78
  %111 = vmatprep.subr.mxu0 0.0
  %112 = vmatpush1.msra.mxu0 0.0
  %113 = vmatprep.subr.mxu0 0.0
  %114 = vmatpush1.msra.mxu0 0.0
  %115 = vmatprep.subr.mxu0 0.0
  %116 = vmatpush1.msra.mxu0 0.0
  %117 = vmatprep.subr.mxu0 0.0
  %118 = vmatpush1.msra.mxu0 0.0
  %119 = vmatprep.subr.mxu0 0.0
  %120 = vmatpush1.msra.mxu0 0.0
  %121 = vmatprep.subr.mxu0 0.0
  %122 = vmatpush1.msra.mxu0 0.0
  %123 = vmatprep.subr.mxu0 0.0
  %124 = vmatpush1.msra.mxu0 0.0
  %125 = vmatprep.subr.mxu0 0.0
  %126 = vmatpush1.msra.mxu0 0.0
  %127 = vmatprep.subr.mxu0 0.0
  %128 = vmatpush1.msra.mxu0 0.0
  %129 = vmatprep.subr.mxu0 0.0
  %130 = vmatpush1.msra.mxu0 0.0
  %131 = vmatprep.subr.mxu0 0.0
  %132 = vmatpush1.msra.mxu0 0.0
  %133 = vmatprep.subr.mxu0 0.0
  %134 = vmatpush1.msra.mxu0 0.0
  %135 = vmatprep.subr.mxu0 0.0
  %136 = vmatpush1.msra.mxu0 0.0
  %137 = vmatprep.subr.mxu0 0.0
  %138 = vmatpush1.msra.mxu0 0.0
  %139 = vmatprep.subr.mxu0 0.0
  %140 = vmatpush1.msra.mxu0 0.0
  %141 = vmatprep.subr.mxu0 0.0
  %142 = vmatpush1.msra.mxu0 0.0
  %143 = vmatprep.subr.mxu0 0.0
  %144 = vmatpush1.msra.mxu0 0.0
  %145 = vmatprep.subr.mxu0 0.0
  %146 = vmatpush1.msra.mxu0 0.0
  %147 = vmatprep.subr.mxu0 0.0
  %148 = vmatpush1.msra.mxu0 0.0
  %149 = vmatprep.subr.mxu0 0.0
  %150 = vmatpush1.msra.mxu0 0.0
  %151 = vmatprep.subr.mxu0 0.0
  %152 = vmatpush1.msra.mxu0 0.0
  %153 = vmatprep.subr.mxu0 0.0
  %154 = vmatpush1.msra.mxu0 0.0
  %155 = vmatprep.subr.mxu0 0.0
  %156 = vmatpush1.msra.mxu0 0.0
  %157 = vmatprep.mubr.f32.mxu0 0.0
  %158 = vmatmul.mubr.f32.gmra.mrb[0].mxu0 %v88
  %v159 = vpop.f32.mrb[0].mxu0
  %v160 = vadd.f32 %v84, %v159
  %v161 = vpop.f32.mrb[0].mxu0
  %162 = vmatprep.mubr.f32.mxu0 0.0
  %163 = vmatmul.mubr.f32.gmra.mrb[0].mxu0 %v91
  %v164 = vpop.f32.mrb[0].mxu0
  %v165 = vadd.f32 %v84, %v164
  %v166 = vpop.f32.mrb[0].mxu0
  %167 = vdwg.mxu0
  %v168 = vmax.f32 %v160, 0.0
  %v169 = vmax.f32 %v165, 0.0
  %vm170 = vcmask 130048
  %171 = vst.msk [vmem:[%s7] sm:$0xff] %vm170, %v168
  %172 = vst.msk [vmem:[%s7 + $0x8] sm:$0xff] %vm170, %v169
  %vm175 = vcmask 1040384
  %v176 = vrot.slane %v168, 7
  %v177 = vrot.slane %v169, 7
  %v178 = vsel %vm175, %v176, %v177
  %v181 = vsel %vm175, 0.0, %v176
  %v182 = vld [vmem:[%s5] sm:$0xff]
  %v183 = vld [vmem:[%s5 + $0x8] sm:$0xff]
  %185 = vset.pattern.permute.xlu0 0
  %186 = vperm.xlu0 %185, %v182
  %v187 = vpop.permute.xlu0 %186
  %190 = vset.pattern.permute.xlu0 0
  %191 = vperm.xlu0 %190, %v183
  %v192 = vpop.permute.xlu0 %191
  %v194 = vmul.f32 %v181, %v187
  %v195 = vmul.f32 %v178, %v192
  %vm196 = vcmask 1046528
  %v197 = vrot.slane %v168, 1
  %v198 = vrot.slane %v169, 1
  %v199 = vsel %vm196, %v197, %v198
  %v202 = vsel %vm196, %v198, 0.0
  %v203 = vld [vmem:[%s6] sm:$0xff]
  %v204 = vld [vmem:[%s6 + $0x8] sm:$0xff]
  %206 = vset.pattern.permute.xlu0 0
  %207 = vperm.xlu0 %206, %v203
  %v208 = vpop.permute.xlu0 %207
  %211 = vset.pattern.permute.xlu0 0
  %212 = vperm.xlu0 %211, %v204
  %v213 = vpop.permute.xlu0 %212
  %v215 = vmul.f32 %v199, %v208
  %v216 = vmul.f32 %v202, %v213
  %217 = vrot.lane.b32.xlu0 %v168, 16
  %v218 = vpop.permute.xlu0 %217
  %219 = vrot.lane.b32.xlu0 %v169, 16
  %v220 = vpop.permute.xlu0 %219
  %225 = vrot.lane.b32.xlu0 %v215, 32
  %v226 = vpop.permute.xlu0 %225
  %227 = vrot.lane.b32.xlu0 %v216, 32
  %v228 = vpop.permute.xlu0 %227
  %v231 = vsel %vm170, %v194, %v218
  %v232 = vsel %vm170, %v195, %v220
  %vm233 = vcmask 261120
  %v234 = vsel %vm233, %v231, %v226
  %v235 = vsel %vm233, %v232, %v228
  %v236 = vld [vmem:[%s3] sm:$0xff]
  %v237 = vld [vmem:[%s3 + $0x8] sm:$0xff]
  %v238 = vld [vmem:[%s3 + $0x10] sm:$0xff]
  %v239 = vld [vmem:[%s3 + $0x18] sm:$0xff]
  %v240 = vld [vmem:[%s3 + $0x20] sm:$0xff]
  %v241 = vld [vmem:[%s3 + $0x28] sm:$0xff]
  %v242 = vld [vmem:[%s4] sm:$0x1]
  %v244 = vlaneseq
  %v245 = vshrl.u32 %v244, 7
  %v246 = vsub.s32 0, %v245
  %v247 = vrot.slane %v242, %v246
  %vm249 = vcmask 392192
  %v251 = vsel %vm249, %v234, 0
  %v254 = vsel %vm249, %v235, 0
  %256 = vmatprep.subr.mxu0 0.0
  %257 = vmatpush1.msra.mxu0 %v236
  %258 = vmatprep.subr.mxu0 0.0
  %259 = vmatpush1.msra.mxu0 %v237
  %260 = vmatprep.subr.mxu0 0.0
  %261 = vmatpush1.msra.mxu0 %v238
  %262 = vmatprep.subr.mxu0 0.0
  %263 = vmatpush1.msra.mxu0 %v239
  %264 = vmatprep.subr.mxu0 0.0
  %265 = vmatpush1.msra.mxu0 %v240
  %266 = vmatprep.subr.mxu0 0.0
  %267 = vmatpush1.msra.mxu0 %v241
  %268 = vmatprep.subr.mxu0 0.0
  %269 = vmatpush1.msra.mxu0 0.0
  %270 = vmatprep.subr.mxu0 0.0
  %271 = vmatpush1.msra.mxu0 0.0
  %272 = vmatprep.subr.mxu0 0.0
  %273 = vmatpush1.msra.mxu0 0.0
  %274 = vmatprep.subr.mxu0 0.0
  %275 = vmatpush1.msra.mxu0 0.0
  %276 = vmatprep.subr.mxu0 0.0
  %277 = vmatpush1.msra.mxu0 0.0
  %278 = vmatprep.subr.mxu0 0.0
  %279 = vmatpush1.msra.mxu0 0.0
  %280 = vmatprep.subr.mxu0 0.0
  %281 = vmatpush1.msra.mxu0 0.0
  %282 = vmatprep.subr.mxu0 0.0
  %283 = vmatpush1.msra.mxu0 0.0
  %284 = vmatprep.subr.mxu0 0.0
  %285 = vmatpush1.msra.mxu0 0.0
  %286 = vmatprep.subr.mxu0 0.0
  %287 = vmatpush1.msra.mxu0 0.0
  %288 = vmatprep.subr.mxu0 0.0
  %289 = vmatpush1.msra.mxu0 0.0
  %290 = vmatprep.subr.mxu0 0.0
  %291 = vmatpush1.msra.mxu0 0.0
  %292 = vmatprep.subr.mxu0 0.0
  %293 = vmatpush1.msra.mxu0 0.0
  %294 = vmatprep.subr.mxu0 0.0
  %295 = vmatpush1.msra.mxu0 0.0
  %296 = vmatprep.subr.mxu0 0.0
  %297 = vmatpush1.msra.mxu0 0.0
  %298 = vmatprep.subr.mxu0 0.0
  %299 = vmatpush1.msra.mxu0 0.0
  %300 = vmatprep.subr.mxu0 0.0
  %301 = vmatpush1.msra.mxu0 0.0
  %302 = vmatprep.subr.mxu0 0.0
  %303 = vmatpush1.msra.mxu0 0.0
  %304 = vmatprep.subr.mxu0 0.0
  %305 = vmatpush1.msra.mxu0 0.0
  %306 = vmatprep.subr.mxu0 0.0
  %307 = vmatpush1.msra.mxu0 0.0
  %308 = vmatprep.subr.mxu0 0.0
  %309 = vmatpush1.msra.mxu0 0.0
  %310 = vmatprep.subr.mxu0 0.0
  %311 = vmatpush1.msra.mxu0 0.0
  %312 = vmatprep.subr.mxu0 0.0
  %313 = vmatpush1.msra.mxu0 0.0
  %314 = vmatprep.subr.mxu0 0.0
  %315 = vmatpush1.msra.mxu0 0.0
  %316 = vmatprep.subr.mxu0 0.0
  %317 = vmatpush1.msra.mxu0 0.0
  %318 = vmatprep.subr.mxu0 0.0
  %319 = vmatpush1.msra.mxu0 0.0
  %320 = vmatprep.mubr.f32.mxu0 0.0
  %321 = vmatmul.mubr.f32.gmra.mrb[0].mxu0 %v251
  %v322 = vpop.f32.mrb[0].mxu0
  %v323 = vadd.f32 %v247, %v322
  %v324 = vpop.f32.mrb[0].mxu0
  %325 = vmatprep.mubr.f32.mxu0 0.0
  %326 = vmatmul.mubr.f32.gmra.mrb[0].mxu0 %v254
  %v327 = vpop.f32.mrb[0].mxu0
  %v328 = vadd.f32 %v247, %v327
  %v329 = vpop.f32.mrb[0].mxu0
  %330 = vdwg.mxu0
  %331 = vst.msk [vmem:[%s8] sm:$0xff] %vm233, %v323
  %332 = vst.msk [vmem:[%s8 + $0x8] sm:$0xff] %vm233, %v328
  // Predicated region
  $region30: #{autoencoder_simple_forward.1} parent=0 // pred_check
    _
  $region31: #{autoencoder_simple_forward.1} parent=0 // pred_check_branch
    %334 = sbr.rel (0) target = $region33
  $region32: #{autoencoder_simple_forward.1} parent=0 // pred_region
    _
  $region33: #{autoencoder_simple_forward.1} parent=0 // pred_fallthru
    _
  // Predicated region
  $region34: #{autoencoder_simple_forward.1} parent=0 // pred_check
    _
  $region35: #{autoencoder_simple_forward.1} parent=0 // pred_check_branch
    %336 = sbr.rel (0) target = $region37
  $region36: #{autoencoder_simple_forward.1} parent=0 // pred_region
    _
  $region37: #{autoencoder_simple_forward.1} parent=0 // pred_fallthru
    _
  // Predicated region
  $region38: #{autoencoder_simple_forward.1} parent=0 // pred_check
    _
  $region39: #{autoencoder_simple_forward.1} parent=0 // pred_check_branch
    %338 = sbr.rel (0) target = $region41
  $region40: #{autoencoder_simple_forward.1} parent=0 // pred_region
    _
  $region41: #{autoencoder_simple_forward.1} parent=0 // pred_fallthru
    _
  // Predicated region
  $region42: #{autoencoder_simple_forward.1} parent=0 // pred_check
    _
  $region43: #{autoencoder_simple_forward.1} parent=0 // pred_check_branch
    %340 = sbr.rel (0) target = $region45
  $region44: #{autoencoder_simple_forward.1} parent=0 // pred_region
    _
  $region45: #{autoencoder_simple_forward.1} parent=0 // pred_fallthru
    _

</llo_original>
